<compile_context>
chip_gen: v7x
topology: tpu7x:2x2x1
jax: 0.10.0
libtpu: 0.0.40
codegen_flags: <defaults>
</compile_context>

<pallas_src>
import inspect

import jax
import jax.numpy as jnp
from jax.experimental import pallas as pl
from jax.experimental.pallas import tpu as pltpu

_LANE = 128
_SUBLANE = 8

_HAS_BUFFERED = (
    hasattr(pl, "Buffered")
    and "pipeline_mode" in inspect.signature(pl.BlockSpec).parameters
)


def _round_up(v, m):
    return (v + m - 1) // m * m


# --------------------------------------------------------------------------
# Parameter preparation (hoisted out of the per-call hot path)
# --------------------------------------------------------------------------
def prepare_ann_params(params, *, activation="silu", out_activation=None,
                       scale=1.0, compute_dtype=jnp.bfloat16):
    """Pad hidden widths to 128 lanes and cast weights ONCE.

    Args:
      params: list of (W, b); W shaped (fan_in, fan_out) (transposed vs PyTorch),
        b shaped (fan_out,).
      activation: hidden activation ('silu' | 'relu' | 'sigmoid').
      out_activation: None or 'tanh'.
      scale: output scale (folded into the last layer when out_activation is None).
      compute_dtype: MXU operand dtype (default bfloat16; accumulation stays f32).

    Returns a dict consumed by ann_forward.
    """
    compute_dtype = jnp.dtype(compute_dtype)
    scale = float(scale)
    num_linears = len(params)
    n_in = params[0][0].shape[0]
    n_out = params[-1][0].shape[1]

    # n_in / n_out stay exact (full-dim blocks, no HBM traffic inflation);
    # only the hidden widths are padded to 128 lanes.
    dims = [n_in] + [w.shape[1] for w, _ in params]
    pdims = list(dims)
    for i in range(1, num_linears):           # hidden widths only
        pdims[i] = _round_up(dims[i], _LANE)

    fold_scale = (out_activation is None) and (scale != 1.0)
    kernel_scale = 1.0 if fold_scale else scale

    flat_args = []
    for li, (w, b) in enumerate(params):
        w = jnp.asarray(w, jnp.float32)
        b = jnp.asarray(b, jnp.float32)
        if fold_scale and li == num_linears - 1:
            w = w * scale
            b = b * scale
        fan_in, fan_out = w.shape
        wp = (jnp.zeros((pdims[li], pdims[li + 1]), compute_dtype)
              .at[:fan_in, :fan_out].set(w.astype(compute_dtype)))
        bp = (jnp.zeros((1, pdims[li + 1]), jnp.float32)
              .at[0, :fan_out].set(b))
        flat_args += [wp, bp]

    return dict(flat_args=tuple(flat_args), pdims=tuple(pdims),
                num_linears=num_linears, n_in=n_in, n_out=n_out,
                activation=activation, out_activation=out_activation,
                kernel_scale=kernel_scale, compute_dtype=compute_dtype)


# --------------------------------------------------------------------------
# Kernel
# --------------------------------------------------------------------------
def _make_ann_kernel(num_linears, activation, out_activation, scale,
                     compute_dtype):
    """Fused MLP: num_linears x (matmul + bias), activation between, tanh/scale."""

    def kernel(x_ref, *refs):
        o_ref = refs[-1]
        wb = refs[:-1]
        assert len(wb) == 2 * num_linears
        h = x_ref[...].astype(jnp.float32)          # activations kept f32
        for i in range(num_linears):
            w = wb[2 * i][...]                      # compute_dtype (cast in prepare)
            b = wb[2 * i + 1][...]                  # f32 (1, width) row
            h = jnp.dot(h.astype(compute_dtype), w,
                        preferred_element_type=jnp.float32) + b
            if i < num_linears - 1:
                if activation == "silu":
                    h = h * jax.nn.sigmoid(h)       # EUP sigmoid + VPU mul
                elif activation == "relu":
                    h = jnp.maximum(h, 0.0)
                elif activation == "sigmoid":
                    h = jax.nn.sigmoid(h)
                else:
                    raise ValueError(f"unsupported activation: {activation}")
        if out_activation == "tanh":
            h = jnp.tanh(h)                         # EUP
        if scale != 1.0:                            # only when not folded
            h = scale * h
        o_ref[...] = h.astype(o_ref.dtype)

    return kernel


# --------------------------------------------------------------------------
# Wrapper
# --------------------------------------------------------------------------
def _default_block_m(batch):
    """>=4 grid steps when batch permits (2 per v7x TensorCore), tiles up to
    2048 rows, and block_m derived from ceil(batch/n_steps) so batch padding
    never balloons."""
    if batch <= 16:
        return _round_up(max(batch, _SUBLANE), _SUBLANE)
    max_rows = 2048
    n_steps = max(4, pl.cdiv(batch, max_rows))
    return max(_SUBLANE, _round_up(pl.cdiv(batch, n_steps), _SUBLANE))


def ann_forward(x, prepared, *, block_m=None, interpret=False):
    """Fused ANN forward via pl.pallas_call.

    Args:
      x: (batch, n_in) input (f32).
      prepared: output of prepare_ann_params (weights padded/cast once).
      block_m: rows per grid step (default policy: see _default_block_m).
    """
    batch, n_in = x.shape
    assert n_in == prepared["n_in"], "input feature dim mismatch"
    num_linears = prepared["num_linears"]
    pdims = prepared["pdims"]
    n_out = prepared["n_out"]
    compute_dtype = prepared["compute_dtype"]
    out_dtype = x.dtype

    if block_m is None:
        block_m = _default_block_m(batch)
    block_m = max(_SUBLANE, _round_up(int(block_m), _SUBLANE))
    batch_p = _round_up(batch, block_m)
    grid = (batch_p // block_m,)

    # Only the batch dim may need zero padding (feature dims stay exact, so
    # this is cheap and usually a no-op with the default block_m policy).
    xp = x if batch_p == batch else jnp.pad(x, ((0, batch_p - batch), (0, 0)))

    x_spec = pl.BlockSpec((block_m, n_in), lambda i: (i, 0))
    out_spec = pl.BlockSpec((block_m, n_out), lambda i: (i, 0))

    def invariant_spec(shape):
        # Grid-invariant blocks: one VMEM buffer is enough when supported.
        if _HAS_BUFFERED:
            return pl.BlockSpec(shape, lambda i: (0, 0),
                                pipeline_mode=pl.Buffered(1))
        return pl.BlockSpec(shape, lambda i: (0, 0))

    wb_specs = []
    for li in range(num_linears):
        wb_specs.append(invariant_spec((pdims[li], pdims[li + 1])))
        wb_specs.append(invariant_spec((1, pdims[li + 1])))

    # Resident-VMEM estimate: weights/biases (x1 if single-buffered, x2 else),
    # double-buffered x/out tiles, f32 activation headroom.
    wbuf = 1 if _HAS_BUFFERED else 2
    w_bytes = wbuf * sum(pdims[i] * pdims[i + 1]
                         for i in range(num_linears)) * compute_dtype.itemsize
    b_bytes = wbuf * sum(pdims[1:]) * 4
    io_bytes = 2 * block_m * (n_in * x.dtype.itemsize
                              + n_out * jnp.dtype(out_dtype).itemsize)
    act_bytes = 3 * block_m * max(pdims) * 4
    est = w_bytes + b_bytes + io_bytes + act_bytes

    cp_kwargs = dict(dimension_semantics=("parallel",))
    if est > 16 * 2**20:              # exceeds the default scoped-VMEM limit
        try:
            vmem_cap = pltpu.get_tpu_info().vmem_capacity_bytes
        except Exception:
            vmem_cap = 64 * 2**20     # conservative fallback (v7x per-TC size)
        cp_kwargs["vmem_limit_bytes"] = min(int(1.4 * est),
                                            int(0.85 * vmem_cap))

    kernel = _make_ann_kernel(num_linears, prepared["activation"],
                              prepared["out_activation"],
                              prepared["kernel_scale"], compute_dtype)

    out_p = pl.pallas_call(
        kernel,
        out_shape=jax.ShapeDtypeStruct((batch_p, n_out), out_dtype),
        grid_spec=pltpu.PrefetchScalarGridSpec(
            num_scalar_prefetch=0,
            grid=grid,
            in_specs=[x_spec] + wb_specs,
            out_specs=out_spec,
        ),
        compiler_params=pltpu.CompilerParams(**cp_kwargs),
        interpret=interpret,
    )(xp, *prepared["flat_args"])

    return out_p if batch_p == batch else out_p[:batch]


# --------------------------------------------------------------------------
# Reference + init (for the self-test)
# --------------------------------------------------------------------------
def init_ann_params(key, n_in, n_out, n_nodes, n_layers):
    """PyTorch-Linear-style init: U(-1/sqrt(fan_in), 1/sqrt(fan_in))."""
    dims = [n_in] + [n_nodes] * n_layers + [n_out]
    params = []
    for fan_in, fan_out in zip(dims[:-1], dims[1:]):
        key, kw, kb = jax.random.split(key, 3)
        bound = 1.0 / jnp.sqrt(fan_in)
        w = jax.random.uniform(kw, (fan_in, fan_out), jnp.float32, -bound, bound)
        b = jax.random.uniform(kb, (fan_out,), jnp.float32, -bound, bound)
        params.append((w, b))
    return params


def ann_reference(x, params, out_activation=None, scale=1.0):
    """Pure-JAX reference mirroring the PyTorch forward (highest precision)."""
    h = x
    n = len(params)
    for i, (w, b) in enumerate(params):
        h = jnp.dot(h, w, precision=jax.lax.Precision.HIGHEST) + b
        if i < n - 1:
            h = h * jax.nn.sigmoid(h)  # SiLU
    if out_activation == "tanh":
        h = jnp.tanh(h)
    return scale * h


if __name__ == "__main__":
    # Module-consistent small shapes: nNodes=32, nLayers=3 -> 4 linear layers.
    # batch=64 with the default block_m policy gives a 4-step batch grid.
    batch, n_in, n_nodes, n_layers, n_out = 64, 16, 32, 3, 4

    key = jax.random.PRNGKey(0)
    key, kx = jax.random.split(key)
    x = jax.random.normal(kx, (batch, n_in), jnp.float32)
    params = init_ann_params(key, n_in, n_out, n_nodes, n_layers)

    y_ref = ann_reference(x, params, out_activation="tanh", scale=2.0)

    # 1) f32 MXU operands, tanh output, scale=2.0 (scale stays in epilogue).
    prep_f32 = prepare_ann_params(params, out_activation="tanh", scale=2.0,
                                  compute_dtype=jnp.float32)
    y = jax.block_until_ready(ann_forward(x, prep_f32))
    assert y.shape == (batch, n_out)
    assert jnp.allclose(y, y_ref, atol=2e-3, rtol=2e-3)

    # 2) Default bf16 MXU operands with f32 accumulation (looser tolerance:
    #    operand rounding compounds through 4 stacked layers).
    prep_bf16 = prepare_ann_params(params, out_activation="tanh", scale=2.0)
    y_bf16 = jax.block_until_ready(ann_forward(x, prep_bf16))
    assert y_bf16.shape == (batch, n_out)
    assert jnp.allclose(y_bf16, y_ref, atol=5e-2, rtol=5e-2)

    # 3) No output activation -> scale folded into the last layer's W/b.
    prep_lin = prepare_ann_params(params, out_activation=None, scale=0.5,
                                  compute_dtype=jnp.float32)
    y_lin = jax.block_until_ready(ann_forward(x, prep_lin))
    y_lin_ref = ann_reference(x, params, out_activation=None, scale=0.5)
    assert jnp.allclose(y_lin, y_lin_ref, atol=2e-3, rtol=2e-3)

    print("KERNEL_OK")
</pallas_src>

<mosaic_0001>
module attributes {stable_mosaic.version = 11 : i64} {
  func.func @kernel(%arg0: i32, %arg1: memref<16x16xf32, #tpu.memory_space<vmem>>, %arg2: memref<16x128xf32, #tpu.memory_space<vmem>>, %arg3: memref<1x128xf32, #tpu.memory_space<vmem>>, %arg4: memref<128x128xf32, #tpu.memory_space<vmem>>, %arg5: memref<1x128xf32, #tpu.memory_space<vmem>>, %arg6: memref<128x128xf32, #tpu.memory_space<vmem>>, %arg7: memref<1x128xf32, #tpu.memory_space<vmem>>, %arg8: memref<128x4xf32, #tpu.memory_space<vmem>>, %arg9: memref<1x4xf32, #tpu.memory_space<vmem>>, %arg10: memref<16x4xf32, #tpu.memory_space<vmem>>) attributes {dimension_semantics = [#tpu.dimension_semantics<parallel>], iteration_bounds = array<i64: 4>, scalar_prefetch = 0 : i64, scratch_operands = 0 : i64, tpu.core_type = #tpu.core_type<tc>, window_params = [{transform_indices = @transform_0, window_bounds = array<i64: 16, 16>}, {pipeline_mode = #tpu.pipeline_mode<synchronous>, transform_indices = @transform_1, window_bounds = array<i64: 16, 128>}, {pipeline_mode = #tpu.pipeline_mode<synchronous>, transform_indices = @transform_2, window_bounds = array<i64: 1, 128>}, {pipeline_mode = #tpu.pipeline_mode<synchronous>, transform_indices = @transform_3, window_bounds = array<i64: 128, 128>}, {pipeline_mode = #tpu.pipeline_mode<synchronous>, transform_indices = @transform_4, window_bounds = array<i64: 1, 128>}, {pipeline_mode = #tpu.pipeline_mode<synchronous>, transform_indices = @transform_5, window_bounds = array<i64: 128, 128>}, {pipeline_mode = #tpu.pipeline_mode<synchronous>, transform_indices = @transform_6, window_bounds = array<i64: 1, 128>}, {pipeline_mode = #tpu.pipeline_mode<synchronous>, transform_indices = @transform_7, window_bounds = array<i64: 128, 4>}, {pipeline_mode = #tpu.pipeline_mode<synchronous>, transform_indices = @transform_8, window_bounds = array<i64: 1, 4>}, {transform_indices = @transform_9, window_bounds = array<i64: 16, 4>}]} {
    %c0 = arith.constant 0 : index
    %c0_0 = arith.constant 0 : index
    %0 = vector.load %arg1[%c0, %c0_0] : memref<16x16xf32, #tpu.memory_space<vmem>>, vector<16x16xf32>
    %c0_1 = arith.constant 0 : index
    %c0_2 = arith.constant 0 : index
    %1 = vector.load %arg2[%c0_1, %c0_2] : memref<16x128xf32, #tpu.memory_space<vmem>>, vector<16x128xf32>
    %c0_3 = arith.constant 0 : index
    %c0_4 = arith.constant 0 : index
    %2 = vector.load %arg3[%c0_3, %c0_4] : memref<1x128xf32, #tpu.memory_space<vmem>>, vector<1x128xf32>
    %cst = arith.constant dense<0.000000e+00> : vector<16x128xf32>
    %3 = tpu.matmul %0, %1, %cst {dimension_numbers = #tpu.dot_dimension_numbers<[1], [0], [0], [1], [0, 0, 1, 1], [], []>} : vector<16x16xf32>, vector<16x128xf32>, vector<16x128xf32> -> vector<16x128xf32>
    %4 = vector.broadcast %2 : vector<1x128xf32> to vector<16x128xf32>
    %5 = arith.addf %3, %4 : vector<16x128xf32>
    %6 = arith.negf %5 : vector<16x128xf32>
    %7 = math.exp %6 : vector<16x128xf32>
    %cst_5 = arith.constant 1.000000e+00 : f32
    %8 = vector.broadcast %cst_5 : f32 to vector<16x128xf32>
    %9 = arith.addf %8, %7 : vector<16x128xf32>
    %10 = arith.divf %8, %9 : vector<16x128xf32>
    %11 = arith.mulf %5, %10 : vector<16x128xf32>
    %c0_6 = arith.constant 0 : index
    %c0_7 = arith.constant 0 : index
    %12 = vector.load %arg4[%c0_6, %c0_7] : memref<128x128xf32, #tpu.memory_space<vmem>>, vector<128x128xf32>
    %c0_8 = arith.constant 0 : index
    %c0_9 = arith.constant 0 : index
    %13 = vector.load %arg5[%c0_8, %c0_9] : memref<1x128xf32, #tpu.memory_space<vmem>>, vector<1x128xf32>
    %cst_10 = arith.constant dense<0.000000e+00> : vector<16x128xf32>
    %14 = tpu.matmul %11, %12, %cst_10 {dimension_numbers = #tpu.dot_dimension_numbers<[1], [0], [0], [1], [0, 0, 1, 1], [], []>} : vector<16x128xf32>, vector<128x128xf32>, vector<16x128xf32> -> vector<16x128xf32>
    %15 = vector.broadcast %13 : vector<1x128xf32> to vector<16x128xf32>
    %16 = arith.addf %14, %15 : vector<16x128xf32>
    %17 = arith.negf %16 : vector<16x128xf32>
    %18 = math.exp %17 : vector<16x128xf32>
    %cst_11 = arith.constant 1.000000e+00 : f32
    %19 = vector.broadcast %cst_11 : f32 to vector<16x128xf32>
    %20 = arith.addf %19, %18 : vector<16x128xf32>
    %21 = arith.divf %19, %20 : vector<16x128xf32>
    %22 = arith.mulf %16, %21 : vector<16x128xf32>
    %c0_12 = arith.constant 0 : index
    %c0_13 = arith.constant 0 : index
    %23 = vector.load %arg6[%c0_12, %c0_13] : memref<128x128xf32, #tpu.memory_space<vmem>>, vector<128x128xf32>
    %c0_14 = arith.constant 0 : index
    %c0_15 = arith.constant 0 : index
    %24 = vector.load %arg7[%c0_14, %c0_15] : memref<1x128xf32, #tpu.memory_space<vmem>>, vector<1x128xf32>
    %cst_16 = arith.constant dense<0.000000e+00> : vector<16x128xf32>
    %25 = tpu.matmul %22, %23, %cst_16 {dimension_numbers = #tpu.dot_dimension_numbers<[1], [0], [0], [1], [0, 0, 1, 1], [], []>} : vector<16x128xf32>, vector<128x128xf32>, vector<16x128xf32> -> vector<16x128xf32>
    %26 = vector.broadcast %24 : vector<1x128xf32> to vector<16x128xf32>
    %27 = arith.addf %25, %26 : vector<16x128xf32>
    %28 = arith.negf %27 : vector<16x128xf32>
    %29 = math.exp %28 : vector<16x128xf32>
    %cst_17 = arith.constant 1.000000e+00 : f32
    %30 = vector.broadcast %cst_17 : f32 to vector<16x128xf32>
    %31 = arith.addf %30, %29 : vector<16x128xf32>
    %32 = arith.divf %30, %31 : vector<16x128xf32>
    %33 = arith.mulf %27, %32 : vector<16x128xf32>
    %c0_18 = arith.constant 0 : index
    %c0_19 = arith.constant 0 : index
    %34 = vector.load %arg8[%c0_18, %c0_19] : memref<128x4xf32, #tpu.memory_space<vmem>>, vector<128x4xf32>
    %c0_20 = arith.constant 0 : index
    %c0_21 = arith.constant 0 : index
    %35 = vector.load %arg9[%c0_20, %c0_21] : memref<1x4xf32, #tpu.memory_space<vmem>>, vector<1x4xf32>
    %cst_22 = arith.constant dense<0.000000e+00> : vector<16x4xf32>
    %36 = tpu.matmul %33, %34, %cst_22 {dimension_numbers = #tpu.dot_dimension_numbers<[1], [0], [0], [1], [0, 0, 1, 1], [], []>} : vector<16x128xf32>, vector<128x4xf32>, vector<16x4xf32> -> vector<16x4xf32>
    %37 = vector.broadcast %35 : vector<1x4xf32> to vector<16x4xf32>
    %38 = arith.addf %36, %37 : vector<16x4xf32>
    %39 = math.tanh %38 : vector<16x4xf32>
    %cst_23 = arith.constant 2.000000e+00 : f32
    %40 = vector.broadcast %cst_23 : f32 to vector<16x4xf32>
    %41 = arith.mulf %40, %39 : vector<16x4xf32>
    %c0_24 = arith.constant 0 : index
    %c0_25 = arith.constant 0 : index
    %42 = vector.load %arg10[%c0_24, %c0_25] : memref<16x4xf32, #tpu.memory_space<vmem>>, vector<16x4xf32>
    tpu.vector_store %arg10[%c0_24, %c0_25], %41 {strides = array<i32>} : memref<16x4xf32, #tpu.memory_space<vmem>>, vector<16x4xf32>,
    return
  }
  func.func @transform_0(%arg0: i32) -> (i32, i32) {
    %c0_i32 = arith.constant 0 : i32
    %c0_i32_0 = arith.constant 0 : i32
    return %arg0, %c0_i32 : i32, i32
  }
  func.func @transform_1(%arg0: i32) -> (i32, i32) {
    %c0_i32 = arith.constant 0 : i32
    %c0_i32_0 = arith.constant 0 : i32
    %c0_i32_1 = arith.constant 0 : i32
    return %c0_i32, %c0_i32_0 : i32, i32
  }
  func.func @transform_2(%arg0: i32) -> (i32, i32) {
    %c0_i32 = arith.constant 0 : i32
    %c0_i32_0 = arith.constant 0 : i32
    %c0_i32_1 = arith.constant 0 : i32
    return %c0_i32, %c0_i32_0 : i32, i32
  }
  func.func @transform_3(%arg0: i32) -> (i32, i32) {
    %c0_i32 = arith.constant 0 : i32
    %c0_i32_0 = arith.constant 0 : i32
    %c0_i32_1 = arith.constant 0 : i32
    return %c0_i32, %c0_i32_0 : i32, i32
  }
  func.func @transform_4(%arg0: i32) -> (i32, i32) {
    %c0_i32 = arith.constant 0 : i32
    %c0_i32_0 = arith.constant 0 : i32
    %c0_i32_1 = arith.constant 0 : i32
    return %c0_i32, %c0_i32_0 : i32, i32
  }
  func.func @transform_5(%arg0: i32) -> (i32, i32) {
    %c0_i32 = arith.constant 0 : i32
    %c0_i32_0 = arith.constant 0 : i32
    %c0_i32_1 = arith.constant 0 : i32
    return %c0_i32, %c0_i32_0 : i32, i32
  }
  func.func @transform_6(%arg0: i32) -> (i32, i32) {
    %c0_i32 = arith.constant 0 : i32
    %c0_i32_0 = arith.constant 0 : i32
    %c0_i32_1 = arith.constant 0 : i32
    return %c0_i32, %c0_i32_0 : i32, i32
  }
  func.func @transform_7(%arg0: i32) -> (i32, i32) {
    %c0_i32 = arith.constant 0 : i32
    %c0_i32_0 = arith.constant 0 : i32
    %c0_i32_1 = arith.constant 0 : i32
    return %c0_i32, %c0_i32_0 : i32, i32
  }
  func.func @transform_8(%arg0: i32) -> (i32, i32) {
    %c0_i32 = arith.constant 0 : i32
    %c0_i32_0 = arith.constant 0 : i32
    %c0_i32_1 = arith.constant 0 : i32
    return %c0_i32, %c0_i32_0 : i32, i32
  }
  func.func @transform_9(%arg0: i32) -> (i32, i32) {
    %c0_i32 = arith.constant 0 : i32
    %c0_i32_0 = arith.constant 0 : i32
    return %arg0, %c0_i32 : i32, i32
  }
}

</mosaic_0001>

<llo_original>
// kernel: tpu_custom_call.1
$region0: #{tpu_custom_call.1}
  #allocation0 [shape = 'u32[]', space=smem, size = 0x4, offset = 0x4, fixed_abs, tag = 'smem constant byte address 0x4 - core index']
  #allocation1 [shape = 'u32[144,128]{1,0:T(1,128)}', space=vmem, size = 0x12000, scoped, tag = 'internal scratch']
  %s0 = inlined_call_operand.vmem [shape: f32[64,16], index: 0, kind: input, shape index: {}]
  %s1 = inlined_call_operand.vmem [shape: f32[16,128], index: 1, kind: input, shape index: {}]
  %s2 = inlined_call_operand.vmem [shape: f32[1,128], index: 2, kind: input, shape index: {}]
  %s3 = inlined_call_operand.vmem [shape: f32[128,128], index: 3, kind: input, shape index: {}]
  %s4 = inlined_call_operand.vmem [shape: f32[1,128], index: 4, kind: input, shape index: {}]
  %s5 = inlined_call_operand.hbm [shape: f32[128,128], index: 5, kind: input, shape index: {}]
  %s6 = inlined_call_operand.vmem [shape: f32[1,128], index: 6, kind: input, shape index: {}]
  %s7 = inlined_call_operand.vmem [shape: f32[128,4], index: 7, kind: input, shape index: {}]
  %s8 = inlined_call_operand.vmem [shape: f32[1,4], index: 8, kind: input, shape index: {}]
  %s9 = inlined_call_operand.vmem [shape: f32[64,4], index: 9, kind: output, shape index: {}]
  %s10 = sld [smem:[#allocation0]]
  $region73: #{tpu_custom_call.1} parent=0
    _
  %s12 = ssub.s32 1, %s10
  %s13 = scalar_select 0, %s12, %s10
  $region1: #{tpu_custom_call.1} parent=0
    #allocation2 [shape = 'u8[65536]{0}', space=vmem, size = 0x10000, scoped, tag = 'input window, operand 5, single buffered']
    #allocation3 [shape = 's32[2]{0}', space=sflag, size = 0x8, scoped, tag = 'scoped memory for tpu_custom_call.1']
    %14 = vsyncpa [#allocation3], 0
    loop: start=0, step=1, limit=6
    $region2: #{tpu_custom_call.1} parent=1 // loop_pre_header
      _
    $region3: #{tpu_custom_call.1} parent=1 // loop_header
      %s16 = sphi 0, %s20
      %p17 = scmp.ge.s32.totalorder %s16, 6
      %s26 = sphi 0, %s28
      %s29 = sphi 0, %s26
      %s30 = sphi 0, %s29
      %s46 = sphi 0, %s30
      %s50 = sphi 0, %s50
      %s52 = sphi 0, %s50
      %s53 = sphi 0, %s52
      %s67 = sphi 0, %s53
      %s71 = sphi 0, %s71
      %s73 = sphi 0, %s71
      %s74 = sphi 0, %s73
      %s88 = sphi 0, %s74
      %s92 = sphi 0, %s92
      %s94 = sphi 0, %s92
      %s95 = sphi 0, %s94
      %s109 = sphi 0, %s95
      %s113 = sphi 0, %s113
      %s115 = sphi 0, %s113
      %s116 = sphi 0, %s115
      %s130 = sphi 0, %s116
      %s134 = sphi 0, %s134
      %s136 = sphi 0, %s134
      %s137 = sphi 0, %s136
      %s151 = sphi 0, %s137
      %s155 = sphi 0, %s155
      %s157 = sphi 0, %s155
      %s158 = sphi 0, %s157
      %s172 = sphi 0, %s158
      %s176 = sphi 0, %s176
      %s178 = sphi 0, %s176
      %s179 = sphi 0, %s178
      %s193 = sphi 0, %s179
      %s197 = sphi 0, %s197
      %s199 = sphi 0, %s197
      %s200 = sphi 0, %s199
      %s214 = sphi 0, %s200
      %s220 = sphi 0, %s222
      %s223 = sphi 0, %s220
      %s224 = sphi 0, %s223
      %s240 = sphi 0, %s224
    $region4: #{tpu_custom_call.1} parent=1 // loop_header_branch
      %19 = sbr.rel (%p17) target = $region8
    $region5: #{tpu_custom_call.1} parent=1 // loop_body
      %s21 = ssub.s32 %s16, 1
      %s22 = ssub.s32 %s16, 2
      %s23 = sadd.s32 %s16, 1
      %s24 = ssub.s32 %s16, %s23
      %p25 = scmp.eq.s32.totalorder %s24, 0
      %s27 = sadd.s32 %s26, 1
      %s28 = scalar_select %p25, %s26, %s27
      %p31 = pneg %p25
      %p32 = scmp.eq.s32.totalorder %s16, 3
      %p33 = por %p31, %p32
      %p34 = scmp.ne.s32.totalorder %s26, %s29
      %p35 = scmp.eq.s32.totalorder %s16, 0
      %p36 = por %p34, %p35
      %p37 = scmp.ne.s32.totalorder %s26, %s29
      %p38 = scmp.eq.s32.totalorder %s21, 3
      %p39 = por %p37, %p38
      %p40 = scmp.ne.s32.totalorder %s29, %s30
      %p41 = scmp.eq.s32.totalorder %s21, 0
      %p42 = por %p40, %p41
      %p43 = scmp.ne.s32.totalorder %s29, %s30
      %p44 = scmp.eq.s32.totalorder %s22, 3
      %p45 = por %p43, %p44
      %p47 = scmp.ne.s32.totalorder %s30, %s46
      %p48 = scmp.eq.s32.totalorder %s22, 0
      %p49 = por %p47, %p48
      %s51 = sadd.s32 %s50, 1
      %p54 = scmp.eq.s32.totalorder %s16, 3
      %p55 = scmp.ne.s32.totalorder %s50, %s52
      %p56 = scmp.eq.s32.totalorder %s16, 0
      %p57 = por %p55, %p56
      %p58 = scmp.ne.s32.totalorder %s50, %s52
      %p59 = scmp.eq.s32.totalorder %s21, 3
      %p60 = por %p58, %p59
      %p61 = scmp.ne.s32.totalorder %s52, %s53
      %p62 = scmp.eq.s32.totalorder %s21, 0
      %p63 = por %p61, %p62
      %p64 = scmp.ne.s32.totalorder %s52, %s53
      %p65 = scmp.eq.s32.totalorder %s22, 3
      %p66 = por %p64, %p65
      %p68 = scmp.ne.s32.totalorder %s53, %s67
      %p69 = scmp.eq.s32.totalorder %s22, 0
      %p70 = por %p68, %p69
      %s72 = sadd.s32 %s71, 1
      %p75 = scmp.eq.s32.totalorder %s16, 3
      %p76 = scmp.ne.s32.totalorder %s71, %s73
      %p77 = scmp.eq.s32.totalorder %s16, 0
      %p78 = por %p76, %p77
      %p79 = scmp.ne.s32.totalorder %s71, %s73
      %p80 = scmp.eq.s32.totalorder %s21, 3
      %p81 = por %p79, %p80
      %p82 = scmp.ne.s32.totalorder %s73, %s74
      %p83 = scmp.eq.s32.totalorder %s21, 0
      %p84 = por %p82, %p83
      %p85 = scmp.ne.s32.totalorder %s73, %s74
      %p86 = scmp.eq.s32.totalorder %s22, 3
      %p87 = por %p85, %p86
      %p89 = scmp.ne.s32.totalorder %s74, %s88
      %p90 = scmp.eq.s32.totalorder %s22, 0
      %p91 = por %p89, %p90
      %s93 = sadd.s32 %s92, 1
      %p96 = scmp.eq.s32.totalorder %s16, 3
      %p97 = scmp.ne.s32.totalorder %s92, %s94
      %p98 = scmp.eq.s32.totalorder %s16, 0
      %p99 = por %p97, %p98
      %p100 = scmp.ne.s32.totalorder %s92, %s94
      %p101 = scmp.eq.s32.totalorder %s21, 3
      %p102 = por %p100, %p101
      %p103 = scmp.ne.s32.totalorder %s94, %s95
      %p104 = scmp.eq.s32.totalorder %s21, 0
      %p105 = por %p103, %p104
      %p106 = scmp.ne.s32.totalorder %s94, %s95
      %p107 = scmp.eq.s32.totalorder %s22, 3
      %p108 = por %p106, %p107
      %p110 = scmp.ne.s32.totalorder %s95, %s109
      %p111 = scmp.eq.s32.totalorder %s22, 0
      %p112 = por %p110, %p111
      %s114 = sadd.s32 %s113, 1
      %p117 = scmp.eq.s32.totalorder %s16, 3
      %p118 = scmp.ne.s32.totalorder %s113, %s115
      %p119 = scmp.eq.s32.totalorder %s16, 0
      %p120 = por %p118, %p119
      %p121 = scmp.ne.s32.totalorder %s113, %s115
      %p122 = scmp.eq.s32.totalorder %s21, 3
      %p123 = por %p121, %p122
      %p124 = scmp.ne.s32.totalorder %s115, %s116
      %p125 = scmp.eq.s32.totalorder %s21, 0
      %p126 = por %p124, %p125
      %p127 = scmp.ne.s32.totalorder %s115, %s116
      %p128 = scmp.eq.s32.totalorder %s22, 3
      %p129 = por %p127, %p128
      %p131 = scmp.ne.s32.totalorder %s116, %s130
      %p132 = scmp.eq.s32.totalorder %s22, 0
      %p133 = por %p131, %p132
      %s135 = sadd.s32 %s134, 1
      %p138 = scmp.eq.s32.totalorder %s16, 3
      %p139 = scmp.ne.s32.totalorder %s134, %s136
      %p140 = scmp.eq.s32.totalorder %s16, 0
      %p141 = por %p139, %p140
      %p142 = scmp.ne.s32.totalorder %s134, %s136
      %p143 = scmp.eq.s32.totalorder %s21, 3
      %p144 = por %p142, %p143
      %p145 = scmp.ne.s32.totalorder %s136, %s137
      %p146 = scmp.eq.s32.totalorder %s21, 0
      %p147 = por %p145, %p146
      %p148 = scmp.ne.s32.totalorder %s136, %s137
      %p149 = scmp.eq.s32.totalorder %s22, 3
      %p150 = por %p148, %p149
      %p152 = scmp.ne.s32.totalorder %s137, %s151
      %p153 = scmp.eq.s32.totalorder %s22, 0
      %p154 = por %p152, %p153
      %s156 = sadd.s32 %s155, 1
      %p159 = scmp.eq.s32.totalorder %s16, 3
      %p160 = scmp.ne.s32.totalorder %s155, %s157
      %p161 = scmp.eq.s32.totalorder %s16, 0
      %p162 = por %p160, %p161
      %p163 = scmp.ne.s32.totalorder %s155, %s157
      %p164 = scmp.eq.s32.totalorder %s21, 3
      %p165 = por %p163, %p164
      %p166 = scmp.ne.s32.totalorder %s157, %s158
      %p167 = scmp.eq.s32.totalorder %s21, 0
      %p168 = por %p166, %p167
      %p169 = scmp.ne.s32.totalorder %s157, %s158
      %p170 = scmp.eq.s32.totalorder %s22, 3
      %p171 = por %p169, %p170
      %p173 = scmp.ne.s32.totalorder %s158, %s172
      %p174 = scmp.eq.s32.totalorder %s22, 0
      %p175 = por %p173, %p174
      %s177 = sadd.s32 %s176, 1
      %p180 = scmp.eq.s32.totalorder %s16, 3
      %p181 = scmp.ne.s32.totalorder %s176, %s178
      %p182 = scmp.eq.s32.totalorder %s16, 0
      %p183 = por %p181, %p182
      %p184 = scmp.ne.s32.totalorder %s176, %s178
      %p185 = scmp.eq.s32.totalorder %s21, 3
      %p186 = por %p184, %p185
      %p187 = scmp.ne.s32.totalorder %s178, %s179
      %p188 = scmp.eq.s32.totalorder %s21, 0
      %p189 = por %p187, %p188
      %p190 = scmp.ne.s32.totalorder %s178, %s179
      %p191 = scmp.eq.s32.totalorder %s22, 3
      %p192 = por %p190, %p191
      %p194 = scmp.ne.s32.totalorder %s179, %s193
      %p195 = scmp.eq.s32.totalorder %s22, 0
      %p196 = por %p194, %p195
      %s198 = sadd.s32 %s197, 1
      %p201 = scmp.eq.s32.totalorder %s16, 3
      %p202 = scmp.ne.s32.totalorder %s197, %s199
      %p203 = scmp.eq.s32.totalorder %s16, 0
      %p204 = por %p202, %p203
      %p205 = scmp.ne.s32.totalorder %s197, %s199
      %p206 = scmp.eq.s32.totalorder %s21, 3
      %p207 = por %p205, %p206
      %p208 = scmp.ne.s32.totalorder %s199, %s200
      %p209 = scmp.eq.s32.totalorder %s21, 0
      %p210 = por %p208, %p209
      %p211 = scmp.ne.s32.totalorder %s199, %s200
      %p212 = scmp.eq.s32.totalorder %s22, 3
      %p213 = por %p211, %p212
      %p215 = scmp.ne.s32.totalorder %s200, %s214
      %p216 = scmp.eq.s32.totalorder %s22, 0
      %p217 = por %p215, %p216
      %s218 = ssub.s32 %s16, %s23
      %p219 = scmp.eq.s32.totalorder %s218, 0
      %s221 = sadd.s32 %s220, 1
      %s222 = scalar_select %p219, %s220, %s221
      %p225 = pneg %p219
      %p226 = scmp.eq.s32.totalorder %s16, 3
      %p227 = por %p225, %p226
      %p228 = scmp.ne.s32.totalorder %s220, %s223
      %p229 = scmp.eq.s32.totalorder %s16, 0
      %p230 = por %p228, %p229
      %p231 = scmp.ne.s32.totalorder %s220, %s223
      %p232 = scmp.eq.s32.totalorder %s21, 3
      %p233 = por %p231, %p232
      %p234 = scmp.ne.s32.totalorder %s223, %s224
      %p235 = scmp.eq.s32.totalorder %s21, 0
      %p236 = por %p234, %p235
      %p237 = scmp.ne.s32.totalorder %s223, %s224
      %p238 = scmp.eq.s32.totalorder %s22, 3
      %p239 = por %p237, %p238
      %p241 = scmp.ne.s32.totalorder %s224, %s240
      %p242 = scmp.eq.s32.totalorder %s22, 0
      %p243 = por %p241, %p242
      %p244 = scmp.le.s32.totalorder 1, %s16
      %p245 = scmp.lt.s32.totalorder %s16, 5
      %p246 = pnand %p244, %p245
      %p247 = pneg %p246
      // Predicated region
      $region9: #{tpu_custom_call.1} parent=5 // pred_check
        _
      $region10: #{tpu_custom_call.1} parent=5 // pred_check_branch
        %249 = sbr.rel (%p246) target = $region12
      $region11: #{tpu_custom_call.1} parent=5 // pred_region
        %s250 = ssub.s32 %s16, 1
        // Predicated region
        $region13: #{tpu_custom_call.1} parent=11 // pred_check
          %p251 = pneg %p63
        $region14: #{tpu_custom_call.1} parent=11 // pred_check_branch
          %253 = sbr.rel (%p251) target = $region16
        $region15: #{tpu_custom_call.1} parent=11 // pred_region
          _
        $region16: #{tpu_custom_call.1} parent=11 // pred_fallthru
          _
        // Predicated region
        $region17: #{tpu_custom_call.1} parent=11 // pred_check
          %p254 = pneg %p84
        $region18: #{tpu_custom_call.1} parent=11 // pred_check_branch
          %256 = sbr.rel (%p254) target = $region20
        $region19: #{tpu_custom_call.1} parent=11 // pred_region
          _
        $region20: #{tpu_custom_call.1} parent=11 // pred_fallthru
          _
        // Predicated region
        $region21: #{tpu_custom_call.1} parent=11 // pred_check
          %p257 = pneg %p105
        $region22: #{tpu_custom_call.1} parent=11 // pred_check_branch
          %259 = sbr.rel (%p257) target = $region24
        $region23: #{tpu_custom_call.1} parent=11 // pred_region
          _
        $region24: #{tpu_custom_call.1} parent=11 // pred_fallthru
          _
        // Predicated region
        $region25: #{tpu_custom_call.1} parent=11 // pred_check
          %p260 = pneg %p126
        $region26: #{tpu_custom_call.1} parent=11 // pred_check_branch
          %262 = sbr.rel (%p260) target = $region28
        $region27: #{tpu_custom_call.1} parent=11 // pred_region
          _
        $region28: #{tpu_custom_call.1} parent=11 // pred_fallthru
          _
        // Predicated region
        $region29: #{tpu_custom_call.1} parent=11 // pred_check
          %p263 = pneg %p147
        $region30: #{tpu_custom_call.1} parent=11 // pred_check_branch
          %265 = sbr.rel (%p263) target = $region32
        $region31: #{tpu_custom_call.1} parent=11 // pred_region
          %s267 = ssub.s32 2048, 2048
          %268 = vsyncadd [#allocation3], %s267
          %s269 = sshll.u32 [#allocation2], 4
          %s270 = int_to_ptr.vmem [resolvable:$true] %s269
          %275 = dma.hbm_to_vmem [thread:$0]  %s5, 2048, %s270, [#allocation3], 128, 128, 8
        $region32: #{tpu_custom_call.1} parent=11 // pred_fallthru
          _
        // Predicated region
        $region33: #{tpu_custom_call.1} parent=11 // pred_check
          %p276 = pneg %p168
        $region34: #{tpu_custom_call.1} parent=11 // pred_check_branch
          %278 = sbr.rel (%p276) target = $region36
        $region35: #{tpu_custom_call.1} parent=11 // pred_region
          _
        $region36: #{tpu_custom_call.1} parent=11 // pred_fallthru
          _
        // Predicated region
        $region37: #{tpu_custom_call.1} parent=11 // pred_check
          %p279 = pneg %p189
        $region38: #{tpu_custom_call.1} parent=11 // pred_check_branch
          %281 = sbr.rel (%p279) target = $region40
        $region39: #{tpu_custom_call.1} parent=11 // pred_region
          _
        $region40: #{tpu_custom_call.1} parent=11 // pred_fallthru
          _
        // Predicated region
        $region41: #{tpu_custom_call.1} parent=11 // pred_check
          %p282 = pneg %p210
        $region42: #{tpu_custom_call.1} parent=11 // pred_check_branch
          %284 = sbr.rel (%p282) target = $region44
        $region43: #{tpu_custom_call.1} parent=11 // pred_region
          _
        $region44: #{tpu_custom_call.1} parent=11 // pred_fallthru
          _
      $region12: #{tpu_custom_call.1} parent=5 // pred_fallthru
        _
      %p285 = scmp.lt.s32.totalorder %s16, 4
      // Predicated region
      $region45: #{tpu_custom_call.1} parent=5 // pred_check
        %p286 = pneg %p285
      $region46: #{tpu_custom_call.1} parent=5 // pred_check_branch
        %288 = sbr.rel (%p286) target = $region48
      $region47: #{tpu_custom_call.1} parent=5 // pred_region
        // Predicated region
        $region49: #{tpu_custom_call.1} parent=47 // pred_check
          %p289 = pneg %p36
        $region50: #{tpu_custom_call.1} parent=47 // pred_check_branch
          %291 = sbr.rel (%p289) target = $region52
        $region51: #{tpu_custom_call.1} parent=47 // pred_region
          %s292 = smul.u32 2, %s16
          %p293 = scmp.lt.s32.totalorder %s292, 7
          %s294 = scalar_select %p293, %s292, 7
          %s295 = smul.addr %s294, 8
          %s296 = scalar_lea.vmem %s0, %s295
          %s297 = smul.u32 2, %s16
        $region52: #{tpu_custom_call.1} parent=47 // pred_fallthru
          _
      $region48: #{tpu_custom_call.1} parent=5 // pred_fallthru
        _
      %p298 = scmp.le.s32.totalorder 1, %s16
      %p299 = scmp.lt.s32.totalorder %s16, 5
      %p300 = pnand %p298, %p299
      %p301 = pneg %p300
      // Predicated region
      $region53: #{tpu_custom_call.1} parent=5 // pred_check
        _
      $region54: #{tpu_custom_call.1} parent=5 // pred_check_branch
        %303 = sbr.rel (%p300) target = $region56
      $region55: #{tpu_custom_call.1} parent=5 // pred_region
        %s304 = ssub.s32 %s16, 1
        // Predicated region
        $region57: #{tpu_custom_call.1} parent=55 // pred_check
          %p305 = pneg %p147
        $region58: #{tpu_custom_call.1} parent=55 // pred_check_branch
          %307 = sbr.rel (%p305) target = $region60
        $region59: #{tpu_custom_call.1} parent=55 // pred_region
          %308 = dma.done [#allocation3], 2048
        $region60: #{tpu_custom_call.1} parent=55 // pred_fallthru
          _
        %s309 = smul.u32 2, %s21
        %p310 = scmp.lt.s32.totalorder %s309, 7
        %s311 = scalar_select %p310, %s309, 7
        %s312 = smul.addr %s311, 8
        %s313 = scalar_lea.vmem %s0, %s312
        %p314 = pneg %p42
        %p315 = pneg %p39
        %p316 = pneg %p63
        %p317 = pneg %p60
        %p318 = pneg %p84
        %p319 = pneg %p81
        %p320 = pneg %p105
        %p321 = pneg %p102
        %p322 = pneg %p126
        %p323 = pneg %p123
        %p324 = pneg %p147
        %p325 = pneg %p144
        %p326 = pneg %p168
        %p327 = pneg %p165
        %p328 = pneg %p189
        %p329 = pneg %p186
        %p330 = pneg %p210
        %p331 = pneg %p207
        %p332 = pneg %p236
        %p333 = pneg %p233
        %s334 = smul.u32 2, %s21
        %p335 = scmp.lt.s32.totalorder %s334, 7
        %s336 = scalar_select %p335, %s334, 7
        %s337 = smul.addr %s336, 8
        %s338 = scalar_lea.vmem %s9, %s337
        %s339 = smul.u32 2, %s21
        %p340 = scmp.lt.s32.totalorder %s339, 7
        %s341 = scalar_select %p340, %s339, 7
        %s342 = smul.addr %s341, 8
        %s343 = scalar_lea.vmem %s0, %s342
        %s344 = smul.u32 2, %s21
        %s345 = smul.u32 2, %s21
        %p346 = scmp.lt.s32.totalorder %s345, 7
        %s347 = scalar_select %p346, %s345, 7
        %s348 = smul.addr %s347, 8
        %s349 = scalar_lea.vmem %s9, %s348
        %s350 = smul.u32 2, %s21
        %v351 = vld [vmem:[%s343] sm:$0xff]
        %v352 = vld [vmem:[%s343 + $0x8] sm:$0xff]
        %v353 = vld [vmem:[%s1] sm:$0xff]
        %v354 = vld [vmem:[%s1 + $0x8] sm:$0xff]
        %v355 = vld [vmem:[%s2] sm:$0x1]
        %v357 = vlaneseq
        %v358 = vshrl.u32 %v357, 7
        %v359 = vsub.s32 0, %v358
        %v360 = vrot.slane %v355, %v359
        %vm362 = vcmask 130048
        %v364 = vsel %vm362, %v351, 0
        %v367 = vsel %vm362, %v352, 0
        %369 = vmatprep.subr.mxu0 0.0
        %370 = vmatpush1.msra.mxu0 %v353
        %371 = vmatprep.subr.mxu0 0.0
        %372 = vmatpush1.msra.mxu0 %v354
        %373 = vmatprep.subr.mxu0 0.0
        %374 = vmatpush1.msra.mxu0 0.0
        %375 = vmatprep.subr.mxu0 0.0
        %376 = vmatpush1.msra.mxu0 0.0
        %377 = vmatprep.subr.mxu0 0.0
        %378 = vmatpush1.msra.mxu0 0.0
        %379 = vmatprep.subr.mxu0 0.0
        %380 = vmatpush1.msra.mxu0 0.0
        %381 = vmatprep.subr.mxu0 0.0
        %382 = vmatpush1.msra.mxu0 0.0
        %383 = vmatprep.subr.mxu0 0.0
        %384 = vmatpush1.msra.mxu0 0.0
        %385 = vmatprep.subr.mxu0 0.0
        %386 = vmatpush1.msra.mxu0 0.0
        %387 = vmatprep.subr.mxu0 0.0
        %388 = vmatpush1.msra.mxu0 0.0
        %389 = vmatprep.subr.mxu0 0.0
        %390 = vmatpush1.msra.mxu0 0.0
        %391 = vmatprep.subr.mxu0 0.0
        %392 = vmatpush1.msra.mxu0 0.0
        %393 = vmatprep.subr.mxu0 0.0
        %394 = vmatpush1.msra.mxu0 0.0
        %395 = vmatprep.subr.mxu0 0.0
        %396 = vmatpush1.msra.mxu0 0.0
        %397 = vmatprep.subr.mxu0 0.0
        %398 = vmatpush1.msra.mxu0 0.0
        %399 = vmatprep.subr.mxu0 0.0
        %400 = vmatpush1.msra.mxu0 0.0
        %401 = vmatprep.subr.mxu0 0.0
        %402 = vmatpush1.msra.mxu0 0.0
        %403 = vmatprep.subr.mxu0 0.0
        %404 = vmatpush1.msra.mxu0 0.0
        %405 = vmatprep.subr.mxu0 0.0
        %406 = vmatpush1.msra.mxu0 0.0
        %407 = vmatprep.subr.mxu0 0.0
        %408 = vmatpush1.msra.mxu0 0.0
        %409 = vmatprep.subr.mxu0 0.0
        %410 = vmatpush1.msra.mxu0 0.0
        %411 = vmatprep.subr.mxu0 0.0
        %412 = vmatpush1.msra.mxu0 0.0
        %413 = vmatprep.subr.mxu0 0.0
        %414 = vmatpush1.msra.mxu0 0.0
        %415 = vmatprep.subr.mxu0 0.0
        %416 = vmatpush1.msra.mxu0 0.0
        %417 = vmatprep.subr.mxu0 0.0
        %418 = vmatpush1.msra.mxu0 0.0
        %419 = vmatprep.subr.mxu0 0.0
        %420 = vmatpush1.msra.mxu0 0.0
        %421 = vmatprep.subr.mxu0 0.0
        %422 = vmatpush1.msra.mxu0 0.0
        %423 = vmatprep.subr.mxu0 0.0
        %424 = vmatpush1.msra.mxu0 0.0
        %425 = vmatprep.subr.mxu0 0.0
        %426 = vmatpush1.msra.mxu0 0.0
        %427 = vmatprep.subr.mxu0 0.0
        %428 = vmatpush1.msra.mxu0 0.0
        %429 = vmatprep.subr.mxu0 0.0
        %430 = vmatpush1.msra.mxu0 0.0
        %431 = vmatprep.subr.mxu0 0.0
        %432 = vmatpush1.msra.mxu0 0.0
        %433 = vmatprep.mubr.f32.mxu0 0.0
        %434 = vmatmul.mubr.f32.gmra.mrb[0].mxu0 %v364
        %v435 = vpop.f32.mrb[0].mxu0
        %v436 = vadd.f32 %v360, %v435
        %v437 = vpop.f32.mrb[0].mxu0
        %438 = vmatprep.mubr.f32.mxu0 0.0
        %439 = vmatmul.mubr.f32.gmra.mrb[0].mxu0 %v367
        %v440 = vpop.f32.mrb[0].mxu0
        %v441 = vadd.f32 %v360, %v440
        %v442 = vpop.f32.mrb[0].mxu0
        %443 = vdwg.mxu0
        %v444 = vxor.u32 %v436, 2147483648
        %v445 = vxor.u32 %v441, 2147483648
        %v446 = vmul.f32 %v444, 1.442695
        %v447 = vpow.pop %v446
        %v448 = vmul.f32 %v445, 1.442695
        %v449 = vpow.pop %v448
        %v450 = vadd.f32 %v447, 1.0
        %v451 = vadd.f32 %v449, 1.0
        %v452 = vrcp.pop %v450
        %v453 = vmul.f32 1.0, %v452
        %v454 = vrcp.pop %v451
        %v455 = vmul.f32 1.0, %v454
        %v456 = vmul.f32 %v436, %v453
        %v457 = vmul.f32 %v441, %v455
        %v458 = vld [vmem:[%s3] sm:$0xff]
        %v459 = vld [vmem:[%s3 + $0x8] sm:$0xff]
        %v460 = vld [vmem:[%s3 + $0x10] sm:$0xff]
        %v461 = vld [vmem:[%s3 + $0x18] sm:$0xff]
        %v462 = vld [vmem:[%s3 + $0x20] sm:$0xff]
        %v463 = vld [vmem:[%s3 + $0x28] sm:$0xff]
        %v464 = vld [vmem:[%s3 + $0x30] sm:$0xff]
        %v465 = vld [vmem:[%s3 + $0x38] sm:$0xff]
        %v466 = vld [vmem:[%s3 + $0x40] sm:$0xff]
        %v467 = vld [vmem:[%s3 + $0x48] sm:$0xff]
        %v468 = vld [vmem:[%s3 + $0x50] sm:$0xff]
        %v469 = vld [vmem:[%s3 + $0x58] sm:$0xff]
        %v470 = vld [vmem:[%s3 + $0x60] sm:$0xff]
        %v471 = vld [vmem:[%s3 + $0x68] sm:$0xff]
        %v472 = vld [vmem:[%s3 + $0x70] sm:$0xff]
        %v473 = vld [vmem:[%s3 + $0x78] sm:$0xff]
        %v474 = vld [vmem:[%s4] sm:$0x1]
        %v476 = vlaneseq
        %v477 = vshrl.u32 %v476, 7
        %v478 = vsub.s32 0, %v477
        %v479 = vrot.slane %v474, %v478
        %481 = vmatprep.subr.mxu0 0.0
        %482 = vmatpush1.msra.mxu0 %v458
        %483 = vmatprep.subr.mxu0 0.0
        %484 = vmatpush1.msra.mxu0 %v459
        %485 = vmatprep.subr.mxu0 0.0
        %486 = vmatpush1.msra.mxu0 %v460
        %487 = vmatprep.subr.mxu0 0.0
        %488 = vmatpush1.msra.mxu0 %v461
        %489 = vmatprep.subr.mxu0 0.0
        %490 = vmatpush1.msra.mxu0 %v462
        %491 = vmatprep.subr.mxu0 0.0
        %492 = vmatpush1.msra.mxu0 %v463
        %493 = vmatprep.subr.mxu0 0.0
        %494 = vmatpush1.msra.mxu0 %v464
        %495 = vmatprep.subr.mxu0 0.0
        %496 = vmatpush1.msra.mxu0 %v465
        %497 = vmatprep.subr.mxu0 0.0
        %498 = vmatpush1.msra.mxu0 %v466
        %499 = vmatprep.subr.mxu0 0.0
        %500 = vmatpush1.msra.mxu0 %v467
        %501 = vmatprep.subr.mxu0 0.0
        %502 = vmatpush1.msra.mxu0 %v468
        %503 = vmatprep.subr.mxu0 0.0
        %504 = vmatpush1.msra.mxu0 %v469
        %505 = vmatprep.subr.mxu0 0.0
        %506 = vmatpush1.msra.mxu0 %v470
        %507 = vmatprep.subr.mxu0 0.0
        %508 = vmatpush1.msra.mxu0 %v471
        %509 = vmatprep.subr.mxu0 0.0
        %510 = vmatpush1.msra.mxu0 %v472
        %511 = vmatprep.subr.mxu0 0.0
        %512 = vmatpush1.msra.mxu0 %v473
        %513 = vmatprep.subr.mxu0 0.0
        %514 = vmatpush1.msra.mxu0 0.0
        %515 = vmatprep.subr.mxu0 0.0
        %516 = vmatpush1.msra.mxu0 0.0
        %517 = vmatprep.subr.mxu0 0.0
        %518 = vmatpush1.msra.mxu0 0.0
        %519 = vmatprep.subr.mxu0 0.0
        %520 = vmatpush1.msra.mxu0 0.0
        %521 = vmatprep.subr.mxu0 0.0
        %522 = vmatpush1.msra.mxu0 0.0
        %523 = vmatprep.subr.mxu0 0.0
        %524 = vmatpush1.msra.mxu0 0.0
        %525 = vmatprep.subr.mxu0 0.0
        %526 = vmatpush1.msra.mxu0 0.0
        %527 = vmatprep.subr.mxu0 0.0
        %528 = vmatpush1.msra.mxu0 0.0
        %529 = vmatprep.subr.mxu0 0.0
        %530 = vmatpush1.msra.mxu0 0.0
        %531 = vmatprep.subr.mxu0 0.0
        %532 = vmatpush1.msra.mxu0 0.0
        %533 = vmatprep.subr.mxu0 0.0
        %534 = vmatpush1.msra.mxu0 0.0
        %535 = vmatprep.subr.mxu0 0.0
        %536 = vmatpush1.msra.mxu0 0.0
        %537 = vmatprep.subr.mxu0 0.0
        %538 = vmatpush1.msra.mxu0 0.0
        %539 = vmatprep.subr.mxu0 0.0
        %540 = vmatpush1.msra.mxu0 0.0
        %541 = vmatprep.subr.mxu0 0.0
        %542 = vmatpush1.msra.mxu0 0.0
        %543 = vmatprep.subr.mxu0 0.0
        %544 = vmatpush1.msra.mxu0 0.0
        %545 = vmatprep.mubr.f32.mxu0 0.0
        %546 = vmatmul.mubr.f32.gmra.mrb[0].mxu0 %v456
        %v547 = vpop.f32.mrb[0].mxu0
        %v548 = vadd.f32 %v479, %v547
        %v549 = vpop.f32.mrb[0].mxu0
        %550 = vmatprep.mubr.f32.mxu0 0.0
        %551 = vmatmul.mubr.f32.gmra.mrb[0].mxu0 %v457
        %v552 = vpop.f32.mrb[0].mxu0
        %v553 = vadd.f32 %v479, %v552
        %v554 = vpop.f32.mrb[0].mxu0
        %555 = vdwg.mxu0
        %v556 = vxor.u32 %v548, 2147483648
        %v557 = vxor.u32 %v553, 2147483648
        %v558 = vmul.f32 %v556, 1.442695
        %v559 = vpow.pop %v558
        %v560 = vmul.f32 %v557, 1.442695
        %v561 = vpow.pop %v560
        %v562 = vadd.f32 %v559, 1.0
        %v563 = vadd.f32 %v561, 1.0
        %v564 = vrcp.pop %v562
        %v565 = vmul.f32 1.0, %v564
        %v566 = vrcp.pop %v563
        %v567 = vmul.f32 1.0, %v566
        %v568 = vmul.f32 %v548, %v565
        %v569 = vmul.f32 %v553, %v567
        %v570 = vld [vmem:[#allocation2] sm:$0xff]
        %v571 = vld [vmem:[#allocation2 + $0x8] sm:$0xff]
        %v572 = vld [vmem:[#allocation2 + $0x10] sm:$0xff]
        %v573 = vld [vmem:[#allocation2 + $0x18] sm:$0xff]
        %v574 = vld [vmem:[#allocation2 + $0x20] sm:$0xff]
        %v575 = vld [vmem:[#allocation2 + $0x28] sm:$0xff]
        %v576 = vld [vmem:[#allocation2 + $0x30] sm:$0xff]
        %v577 = vld [vmem:[#allocation2 + $0x38] sm:$0xff]
        %v578 = vld [vmem:[#allocation2 + $0x40] sm:$0xff]
        %v579 = vld [vmem:[#allocation2 + $0x48] sm:$0xff]
        %v580 = vld [vmem:[#allocation2 + $0x50] sm:$0xff]
        %v581 = vld [vmem:[#allocation2 + $0x58] sm:$0xff]
        %v582 = vld [vmem:[#allocation2 + $0x60] sm:$0xff]
        %v583 = vld [vmem:[#allocation2 + $0x68] sm:$0xff]
        %v584 = vld [vmem:[#allocation2 + $0x70] sm:$0xff]
        %v585 = vld [vmem:[#allocation2 + $0x78] sm:$0xff]
        %v586 = vld [vmem:[%s6] sm:$0x1]
        %v588 = vlaneseq
        %v589 = vshrl.u32 %v588, 7
        %v590 = vsub.s32 0, %v589
        %v591 = vrot.slane %v586, %v590
        %593 = vmatprep.subr.mxu0 0.0
        %594 = vmatpush1.msra.mxu0 %v570
        %595 = vmatprep.subr.mxu0 0.0
        %596 = vmatpush1.msra.mxu0 %v571
        %597 = vmatprep.subr.mxu0 0.0
        %598 = vmatpush1.msra.mxu0 %v572
        %599 = vmatprep.subr.mxu0 0.0
        %600 = vmatpush1.msra.mxu0 %v573
        %601 = vmatprep.subr.mxu0 0.0
        %602 = vmatpush1.msra.mxu0 %v574
        %603 = vmatprep.subr.mxu0 0.0
        %604 = vmatpush1.msra.mxu0 %v575
        %605 = vmatprep.subr.mxu0 0.0
        %606 = vmatpush1.msra.mxu0 %v576
        %607 = vmatprep.subr.mxu0 0.0
        %608 = vmatpush1.msra.mxu0 %v577
        %609 = vmatprep.subr.mxu0 0.0
        %610 = vmatpush1.msra.mxu0 %v578
        %611 = vmatprep.subr.mxu0 0.0
        %612 = vmatpush1.msra.mxu0 %v579
        %613 = vmatprep.subr.mxu0 0.0
        %614 = vmatpush1.msra.mxu0 %v580
        %615 = vmatprep.subr.mxu0 0.0
        %616 = vmatpush1.msra.mxu0 %v581
        %617 = vmatprep.subr.mxu0 0.0
        %618 = vmatpush1.msra.mxu0 %v582
        %619 = vmatprep.subr.mxu0 0.0
        %620 = vmatpush1.msra.mxu0 %v583
        %621 = vmatprep.subr.mxu0 0.0
        %622 = vmatpush1.msra.mxu0 %v584
        %623 = vmatprep.subr.mxu0 0.0
        %624 = vmatpush1.msra.mxu0 %v585
        %625 = vmatprep.subr.mxu0 0.0
        %626 = vmatpush1.msra.mxu0 0.0
        %627 = vmatprep.subr.mxu0 0.0
        %628 = vmatpush1.msra.mxu0 0.0
        %629 = vmatprep.subr.mxu0 0.0
        %630 = vmatpush1.msra.mxu0 0.0
        %631 = vmatprep.subr.mxu0 0.0
        %632 = vmatpush1.msra.mxu0 0.0
        %633 = vmatprep.subr.mxu0 0.0
        %634 = vmatpush1.msra.mxu0 0.0
        %635 = vmatprep.subr.mxu0 0.0
        %636 = vmatpush1.msra.mxu0 0.0
        %637 = vmatprep.subr.mxu0 0.0
        %638 = vmatpush1.msra.mxu0 0.0
        %639 = vmatprep.subr.mxu0 0.0
        %640 = vmatpush1.msra.mxu0 0.0
        %641 = vmatprep.subr.mxu0 0.0
        %642 = vmatpush1.msra.mxu0 0.0
        %643 = vmatprep.subr.mxu0 0.0
        %644 = vmatpush1.msra.mxu0 0.0
        %645 = vmatprep.subr.mxu0 0.0
        %646 = vmatpush1.msra.mxu0 0.0
        %647 = vmatprep.subr.mxu0 0.0
        %648 = vmatpush1.msra.mxu0 0.0
        %649 = vmatprep.subr.mxu0 0.0
        %650 = vmatpush1.msra.mxu0 0.0
        %651 = vmatprep.subr.mxu0 0.0
        %652 = vmatpush1.msra.mxu0 0.0
        %653 = vmatprep.subr.mxu0 0.0
        %654 = vmatpush1.msra.mxu0 0.0
        %655 = vmatprep.subr.mxu0 0.0
        %656 = vmatpush1.msra.mxu0 0.0
        %657 = vmatprep.mubr.f32.mxu0 0.0
        %658 = vmatmul.mubr.f32.gmra.mrb[0].mxu0 %v568
        %v659 = vpop.f32.mrb[0].mxu0
        %v660 = vadd.f32 %v591, %v659
        %v661 = vpop.f32.mrb[0].mxu0
        %662 = vmatprep.mubr.f32.mxu0 0.0
        %663 = vmatmul.mubr.f32.gmra.mrb[0].mxu0 %v569
        %v664 = vpop.f32.mrb[0].mxu0
        %v665 = vadd.f32 %v591, %v664
        %v666 = vpop.f32.mrb[0].mxu0
        %667 = vdwg.mxu0
        %v668 = vxor.u32 %v660, 2147483648
        %v669 = vxor.u32 %v665, 2147483648
        %v670 = vmul.f32 %v668, 1.442695
        %v671 = vpow.pop %v670
        %v672 = vmul.f32 %v669, 1.442695
        %v673 = vpow.pop %v672
        %v674 = vadd.f32 %v671, 1.0
        %v675 = vadd.f32 %v673, 1.0
        %v676 = vrcp.pop %v674
        %v677 = vmul.f32 1.0, %v676
        %v678 = vrcp.pop %v675
        %v679 = vmul.f32 1.0, %v678
        %v680 = vmul.f32 %v660, %v677
        %v681 = vmul.f32 %v665, %v679
        %v682 = vld [vmem:[%s7] sm:$0xff]
        %v683 = vld [vmem:[%s7 + $0x8] sm:$0xff]
        %v684 = vld [vmem:[%s7 + $0x10] sm:$0xff]
        %v685 = vld [vmem:[%s7 + $0x18] sm:$0xff]
        %v686 = vld [vmem:[%s7 + $0x20] sm:$0xff]
        %v687 = vld [vmem:[%s7 + $0x28] sm:$0xff]
        %v688 = vld [vmem:[%s7 + $0x30] sm:$0xff]
        %v689 = vld [vmem:[%s7 + $0x38] sm:$0xff]
        %v690 = vld [vmem:[%s7 + $0x40] sm:$0xff]
        %v691 = vld [vmem:[%s7 + $0x48] sm:$0xff]
        %v692 = vld [vmem:[%s7 + $0x50] sm:$0xff]
        %v693 = vld [vmem:[%s7 + $0x58] sm:$0xff]
        %v694 = vld [vmem:[%s7 + $0x60] sm:$0xff]
        %v695 = vld [vmem:[%s7 + $0x68] sm:$0xff]
        %v696 = vld [vmem:[%s7 + $0x70] sm:$0xff]
        %v697 = vld [vmem:[%s7 + $0x78] sm:$0xff]
        %v698 = vld [vmem:[%s8] sm:$0x1]
        %v700 = vlaneseq
        %v701 = vshrl.u32 %v700, 7
        %v702 = vsub.s32 0, %v701
        %v703 = vrot.slane %v698, %v702
        %705 = vmatprep.subr.mxu0 0.0
        %706 = vmatpush1.msra.mxu0 %v682
        %707 = vmatprep.subr.mxu0 0.0
        %708 = vmatpush1.msra.mxu0 %v683
        %709 = vmatprep.subr.mxu0 0.0
        %710 = vmatpush1.msra.mxu0 %v684
        %711 = vmatprep.subr.mxu0 0.0
        %712 = vmatpush1.msra.mxu0 %v685
        %713 = vmatprep.subr.mxu0 0.0
        %714 = vmatpush1.msra.mxu0 %v686
        %715 = vmatprep.subr.mxu0 0.0
        %716 = vmatpush1.msra.mxu0 %v687
        %717 = vmatprep.subr.mxu0 0.0
        %718 = vmatpush1.msra.mxu0 %v688
        %719 = vmatprep.subr.mxu0 0.0
        %720 = vmatpush1.msra.mxu0 %v689
        %721 = vmatprep.subr.mxu0 0.0
        %722 = vmatpush1.msra.mxu0 %v690
        %723 = vmatprep.subr.mxu0 0.0
        %724 = vmatpush1.msra.mxu0 %v691
        %725 = vmatprep.subr.mxu0 0.0
        %726 = vmatpush1.msra.mxu0 %v692
        %727 = vmatprep.subr.mxu0 0.0
        %728 = vmatpush1.msra.mxu0 %v693
        %729 = vmatprep.subr.mxu0 0.0
        %730 = vmatpush1.msra.mxu0 %v694
        %731 = vmatprep.subr.mxu0 0.0
        %732 = vmatpush1.msra.mxu0 %v695
        %733 = vmatprep.subr.mxu0 0.0
        %734 = vmatpush1.msra.mxu0 %v696
        %735 = vmatprep.subr.mxu0 0.0
        %736 = vmatpush1.msra.mxu0 %v697
        %737 = vmatprep.subr.mxu0 0.0
        %738 = vmatpush1.msra.mxu0 0.0
        %739 = vmatprep.subr.mxu0 0.0
        %740 = vmatpush1.msra.mxu0 0.0
        %741 = vmatprep.subr.mxu0 0.0
        %742 = vmatpush1.msra.mxu0 0.0
        %743 = vmatprep.subr.mxu0 0.0
        %744 = vmatpush1.msra.mxu0 0.0
        %745 = vmatprep.subr.mxu0 0.0
        %746 = vmatpush1.msra.mxu0 0.0
        %747 = vmatprep.subr.mxu0 0.0
        %748 = vmatpush1.msra.mxu0 0.0
        %749 = vmatprep.subr.mxu0 0.0
        %750 = vmatpush1.msra.mxu0 0.0
        %751 = vmatprep.subr.mxu0 0.0
        %752 = vmatpush1.msra.mxu0 0.0
        %753 = vmatprep.subr.mxu0 0.0
        %754 = vmatpush1.msra.mxu0 0.0
        %755 = vmatprep.subr.mxu0 0.0
        %756 = vmatpush1.msra.mxu0 0.0
        %757 = vmatprep.subr.mxu0 0.0
        %758 = vmatpush1.msra.mxu0 0.0
        %759 = vmatprep.subr.mxu0 0.0
        %760 = vmatpush1.msra.mxu0 0.0
        %761 = vmatprep.subr.mxu0 0.0
        %762 = vmatpush1.msra.mxu0 0.0
        %763 = vmatprep.subr.mxu0 0.0
        %764 = vmatpush1.msra.mxu0 0.0
        %765 = vmatprep.subr.mxu0 0.0
        %766 = vmatpush1.msra.mxu0 0.0
        %767 = vmatprep.subr.mxu0 0.0
        %768 = vmatpush1.msra.mxu0 0.0
        %769 = vmatprep.mubr.f32.mxu0 0.0
        %770 = vmatmul.mubr.f32.gmra.mrb[0].mxu0 %v680
        %v771 = vpop.f32.mrb[0].mxu0
        %v772 = vadd.f32 %v703, %v771
        %v773 = vpop.f32.mrb[0].mxu0
        %774 = vmatprep.mubr.f32.mxu0 0.0
        %775 = vmatmul.mubr.f32.gmra.mrb[0].mxu0 %v681
        %v776 = vpop.f32.mrb[0].mxu0
        %v777 = vadd.f32 %v703, %v776
        %v778 = vpop.f32.mrb[0].mxu0
        %779 = vdwg.mxu0
        %v780 = vtanh.pop %v772
        %v781 = vtanh.pop %v777
        %v782 = vmul.f32 %v780, 2.0
        %v783 = vmul.f32 %v781, 2.0
        %vm784 = vcmask 31744
        %785 = vst.msk [vmem:[%s349] sm:$0xff] %vm784, %v782
        %786 = vst.msk [vmem:[%s349 + $0x8] sm:$0xff] %vm784, %v783
        %s787 = smul.u32 2, %s21
        %p788 = scmp.lt.s32.totalorder %s787, 7
        %s789 = scalar_select %p788, %s787, 7
        %s790 = smul.addr %s789, 8
        %s791 = scalar_lea.vmem %s9, %s790
        // Predicated region
        $region61: #{tpu_custom_call.1} parent=55 // pred_check
          %p792 = pneg %p233
        $region62: #{tpu_custom_call.1} parent=55 // pred_check_branch
          %794 = sbr.rel (%p792) target = $region64
        $region63: #{tpu_custom_call.1} parent=55 // pred_region
          %s795 = smul.u32 2, %s21
        $region64: #{tpu_custom_call.1} parent=55 // pred_fallthru
          _
      $region56: #{tpu_custom_call.1} parent=5 // pred_fallthru
        _
      %p796 = scmp.le.s32.totalorder 2, %s16
      // Predicated region
      $region65: #{tpu_custom_call.1} parent=5 // pred_check
        %p797 = pneg %p796
      $region66: #{tpu_custom_call.1} parent=5 // pred_check_branch
        %799 = sbr.rel (%p797) target = $region68
      $region67: #{tpu_custom_call.1} parent=5 // pred_region
        %s800 = ssub.s32 %s16, 2
        // Predicated region
        $region69: #{tpu_custom_call.1} parent=67 // pred_check
          %p801 = pneg %p239
        $region70: #{tpu_custom_call.1} parent=67 // pred_check_branch
          %803 = sbr.rel (%p801) target = $region72
        $region71: #{tpu_custom_call.1} parent=67 // pred_region
          %s804 = smul.u32 2, %s22
          %p805 = scmp.lt.s32.totalorder %s804, 7
          %s806 = scalar_select %p805, %s804, 7
          %s807 = smul.addr %s806, 8
          %s808 = scalar_lea.vmem %s9, %s807
        $region72: #{tpu_custom_call.1} parent=67 // pred_fallthru
          _
      $region68: #{tpu_custom_call.1} parent=5 // pred_fallthru
        _
    $region6: #{tpu_custom_call.1} parent=1 // loop_footer
      %s20 = sadd.s32 1, %s16
    $region7: #{tpu_custom_call.1} parent=1 // loop_footer_branch
      %15 = sbr.rel target = $region3
    $region8: #{tpu_custom_call.1} parent=1 // loop_exit
      _
    %809 = vsyncpa [#allocation3], 1
    %s810 = scalar_lea.sflag [#allocation3], 1
    %811 = vsyncpa %s810, 1

</llo_original>
